<compile_context>
chip_gen: v7x
topology: tpu7x:2x2x1
jax: 0.10.0
libtpu: 0.0.40
codegen_flags: <defaults>
</compile_context>

<pallas_src>
import functools

import numpy as np

import jax
import jax.numpy as jnp
from jax import lax
from jax.experimental import pallas as pl
from jax.experimental.pallas import tpu as pltpu


def _laplacian_kernel(wmask_ref, x_ref, o_ref, *, H, W):
    """wmask_ref: (2, H*W) column-edge masks; x_ref: (Nb, C, H*W); o_ref: (Nb, Co, H*W)."""
    HW = H * W

    # Channel sum in f32 without materializing an f32 copy of the whole block.
    s = jnp.sum(x_ref[...], axis=1, dtype=jnp.float32)            # (Nb, HW)

    not_left = wmask_ref[0:1, :]                                   # (1, HW)
    not_right = wmask_ref[1:2, :]                                  # (1, HW)

    # 3-tap row sum with zero 'same' padding along W.  pltpu.roll is a lane
    # rotation (np.roll semantics); wrapped elements are zeroed by the masks.
    left = not_left * pltpu.roll(s, 1 % HW, axis=1)
    right = not_right * pltpu.roll(s, (HW - 1) % HW, axis=1)
    rowsum = s + left + right

    # 3-tap column sum with zero 'same' padding along H (shift by one row).
    # Row masks are plain iota comparisons (no integer mod).
    lane = lax.broadcasted_iota(jnp.int32, s.shape, 1)
    up = jnp.where(lane >= W, pltpu.roll(rowsum, W % HW, axis=1), 0.0)
    down = jnp.where(lane < (H - 1) * W,
                     pltpu.roll(rowsum, (HW - W) % HW, axis=1), 0.0)
    box = rowsum + up + down

    # Cast on the (Nb, HW) plane *before* broadcasting over channels, so the
    # only (Nb, Co, HW) value is already in the output dtype.
    lap = (9.0 * s - box).astype(o_ref.dtype)
    o_ref[...] = jnp.broadcast_to(lap[:, None, :], o_ref.shape)


def _pick_batch_block(N, C, out_C, HW, itemsize, budget_bytes):
    """Images per grid step.

    Targets the largest block whose double-buffered in/out footprint (plus f32
    intermediates) fits `budget_bytes`.  Prefers a divisor of N (no ragged last
    block); if no divisor is close to the target, falls back to a cdiv grid
    with a masked ragged last block instead of collapsing to tiny blocks.
    """
    per_image = 2 * (C + out_C) * HW * itemsize + 6 * HW * 4
    target = int(max(1, min(N, budget_bytes // max(per_image, 1))))
    nb = max((d for d in range(1, target + 1) if N % d == 0), default=1)
    if nb * 2 < target:       # divisors of N are all tiny (e.g. prime N)
        nb = target           # ragged last block; Pallas masks OOB writes
    return nb, int(pl.cdiv(N, nb))


def laplacian_layer(x, *, collapse_channels=False,
                    vmem_block_budget_bytes=16 * 1024 * 1024):
    """x: (N, C, H, W).  Returns the fixed-weight Laplacian conv output, NCHW.

    collapse_channels=True writes only one plane per image from the kernel
    (all output channels are identical) and broadcasts outside; use it when
    the consumer can fuse the broadcast (≈2x less kernel HBM traffic).
    """
    N, C, H, W = x.shape
    HW = H * W
    x_flat = x.reshape(N, C, HW)                       # free (contiguous) reshape

    # Column-edge masks, built host-side once (constants), kept VMEM-resident
    # across all grid steps via a constant index_map.
    col = np.arange(HW, dtype=np.int64) % W
    wmask = jnp.asarray(
        np.stack([(col != 0), (col != W - 1)]).astype(np.float32))   # (2, HW)

    out_C = 1 if collapse_channels else C
    nb, steps = _pick_batch_block(N, C, out_C, HW, x.dtype.itemsize,
                                  vmem_block_budget_bytes)
    # NOTE: for very large single images whose (C, H*W) block exceeds the VMEM
    # budget (relevant mostly on v7x's 64 MiB), the next step would be an
    # H-row grid axis with a 1-row halo; not needed at these shapes.

    kernel = functools.partial(_laplacian_kernel, H=H, W=W)
    itemsize = x.dtype.itemsize
    cost = pl.CostEstimate(
        flops=N * (C + 10) * HW,
        transcendentals=0,
        bytes_accessed=N * (C + out_C) * HW * itemsize,
    )

    out = pl.pallas_call(
        kernel,
        out_shape=jax.ShapeDtypeStruct((N, out_C, HW), x.dtype),
        grid=(steps,),
        in_specs=[
            pl.BlockSpec((2, HW), lambda n: (0, 0)),              # resident masks
            pl.BlockSpec((nb, C, HW), lambda n: (n, 0, 0)),
        ],
        out_specs=pl.BlockSpec((nb, out_C, HW), lambda n: (n, 0, 0)),
        compiler_params=pltpu.CompilerParams(
            dimension_semantics=("parallel",),
            vmem_limit_bytes=32 * 1024 * 1024,
        ),
        cost_estimate=cost,
    )(wmask, x_flat)

    out = out.reshape(N, out_C, H, W)
    if collapse_channels and C != 1:
        out = jnp.broadcast_to(out, (N, C, H, W))
    return out


def make_laplacian_weights(input_channel):
    # Exactly the weights LaplacianLayer.__init__ builds (OIHW).
    k = jnp.array([[-1., -1., -1.],
                   [-1., 8., -1.],
                   [-1., -1., -1.]], dtype=jnp.float32)
    return jnp.tile(k[None, None], (input_channel, input_channel, 1, 1))


if __name__ == "__main__":
    N, C, H, W = 2, 4, 16, 16
    key = jax.random.PRNGKey(0)
    x = jax.random.normal(key, (N, C, H, W), dtype=jnp.float32)

    out = jax.block_until_ready(laplacian_layer(x))

    # Pure-JAX reference: PyTorch Conv2d NCHW / OIHW, padding='same', no bias.
    w = make_laplacian_weights(C)
    ref = lax.conv_general_dilated(
        x, w, window_strides=(1, 1), padding="SAME",
        dimension_numbers=("NCHW", "OIHW", "NCHW"))

    assert out.shape == (N, C, H, W)
    err = float(jnp.max(jnp.abs(out - ref)))
    assert jnp.allclose(out, ref, atol=1e-4, rtol=1e-4), err
    print("KERNEL_OK")
</pallas_src>

<mosaic_0001>
module attributes {stable_mosaic.version = 11 : i64} {
  func.func @_laplacian_kernel(%arg0: i32, %arg1: memref<2x256xf32, #tpu.memory_space<vmem>>, %arg2: memref<2x4x256xf32, #tpu.memory_space<vmem>>, %arg3: memref<2x4x256xf32, #tpu.memory_space<vmem>>) attributes {dimension_semantics = [#tpu.dimension_semantics<parallel>], iteration_bounds = array<i64: 1>, scalar_prefetch = 0 : i64, scratch_operands = 0 : i64, tpu.core_type = #tpu.core_type<tc>, window_params = [{pipeline_mode = #tpu.pipeline_mode<synchronous>, transform_indices = @transform_0, window_bounds = array<i64: 2, 256>}, {transform_indices = @transform_1, window_bounds = array<i64: 2, 4, 256>}, {transform_indices = @transform_2, window_bounds = array<i64: 2, 4, 256>}]} {
    %c0 = arith.constant 0 : index
    %c0_0 = arith.constant 0 : index
    %c0_1 = arith.constant 0 : index
    %0 = vector.load %arg2[%c0, %c0_0, %c0_1] : memref<2x4x256xf32, #tpu.memory_space<vmem>>, vector<2x4x256xf32>
    %cst = arith.constant dense<0.000000e+00> : vector<2x256xf32>
    %1 = vector.multi_reduction <add>, %0, %cst [1] : vector<2x4x256xf32> to vector<2x256xf32>
    %c0_2 = arith.constant 0 : index
    %c0_3 = arith.constant 0 : index
    %2 = vector.load %arg1[%c0_2, %c0_3] : memref<2x256xf32, #tpu.memory_space<vmem>>, vector<1x256xf32>
    %c1 = arith.constant 1 : index
    %c0_4 = arith.constant 0 : index
    %3 = vector.load %arg1[%c1, %c0_4] : memref<2x256xf32, #tpu.memory_space<vmem>>, vector<1x256xf32>
    %c1_i32 = arith.constant 1 : i32
    %4 = tpu.dynamic_rotate %1 by %c1_i32 dim 1 : vector<2x256xf32>, i32 -> vector<2x256xf32>
    %5 = vector.broadcast %2 : vector<1x256xf32> to vector<2x256xf32>
    %6 = arith.mulf %5, %4 : vector<2x256xf32>
    %c255_i32 = arith.constant 255 : i32
    %7 = tpu.dynamic_rotate %1 by %c255_i32 dim 1 : vector<2x256xf32>, i32 -> vector<2x256xf32>
    %8 = vector.broadcast %3 : vector<1x256xf32> to vector<2x256xf32>
    %9 = arith.mulf %8, %7 : vector<2x256xf32>
    %10 = arith.addf %1, %6 : vector<2x256xf32>
    %11 = arith.addf %10, %9 : vector<2x256xf32>
    %12 = tpu.iota {dimensions = array<i32: 1>} : vector<2x256xi32>
    %c16_i32 = arith.constant 16 : i32
    %13 = vector.broadcast %c16_i32 : i32 to vector<2x256xi32>
    %14 = arith.cmpi sge, %12, %13 : vector<2x256xi32>
    %c16_i32_5 = arith.constant 16 : i32
    %15 = tpu.dynamic_rotate %11 by %c16_i32_5 dim 1 : vector<2x256xf32>, i32 -> vector<2x256xf32>
    %cst_6 = arith.constant 0.000000e+00 : f32
    %16 = vector.broadcast %cst_6 : f32 to vector<2x256xf32>
    %17 = arith.select %14, %15, %16 : vector<2x256xi1>, vector<2x256xf32>
    %c240_i32 = arith.constant 240 : i32
    %18 = vector.broadcast %c240_i32 : i32 to vector<2x256xi32>
    %19 = arith.cmpi slt, %12, %18 : vector<2x256xi32>
    %c240_i32_7 = arith.constant 240 : i32
    %20 = tpu.dynamic_rotate %11 by %c240_i32_7 dim 1 : vector<2x256xf32>, i32 -> vector<2x256xf32>
    %cst_8 = arith.constant 0.000000e+00 : f32
    %21 = vector.broadcast %cst_8 : f32 to vector<2x256xf32>
    %22 = arith.select %19, %20, %21 : vector<2x256xi1>, vector<2x256xf32>
    %23 = arith.addf %11, %17 : vector<2x256xf32>
    %24 = arith.addf %23, %22 : vector<2x256xf32>
    %cst_9 = arith.constant 9.000000e+00 : f32
    %25 = vector.broadcast %cst_9 : f32 to vector<2x256xf32>
    %26 = arith.mulf %25, %1 : vector<2x256xf32>
    %27 = arith.subf %26, %24 : vector<2x256xf32>
    %28 = vector.shape_cast %27 : vector<2x256xf32> to vector<2x1x256xf32>
    %29 = vector.shape_cast %28 : vector<2x1x256xf32> to vector<2x1x256xf32>
    %30 = vector.broadcast %29 : vector<2x1x256xf32> to vector<2x4x256xf32>
    %c0_10 = arith.constant 0 : index
    %c0_11 = arith.constant 0 : index
    %c0_12 = arith.constant 0 : index
    %31 = vector.load %arg3[%c0_10, %c0_11, %c0_12] : memref<2x4x256xf32, #tpu.memory_space<vmem>>, vector<2x4x256xf32>
    tpu.vector_store %arg3[%c0_10, %c0_11, %c0_12], %30 {strides = array<i32>} : memref<2x4x256xf32, #tpu.memory_space<vmem>>, vector<2x4x256xf32>,
    return
  }
  func.func @transform_0(%arg0: i32) -> (i32, i32) {
    %c0_i32 = arith.constant 0 : i32
    %c0_i32_0 = arith.constant 0 : i32
    %c0_i32_1 = arith.constant 0 : i32
    return %c0_i32, %c0_i32_0 : i32, i32
  }
  func.func @transform_1(%arg0: i32) -> (i32, i32, i32) {
    %c0_i32 = arith.constant 0 : i32
    %c0_i32_0 = arith.constant 0 : i32
    %c0_i32_1 = arith.constant 0 : i32
    return %arg0, %c0_i32, %c0_i32_0 : i32, i32, i32
  }
  func.func @transform_2(%arg0: i32) -> (i32, i32, i32) {
    %c0_i32 = arith.constant 0 : i32
    %c0_i32_0 = arith.constant 0 : i32
    %c0_i32_1 = arith.constant 0 : i32
    return %arg0, %c0_i32, %c0_i32_0 : i32, i32, i32
  }
}

</mosaic_0001>

<llo_original>
// kernel: tpu_custom_call.1
$region0: #{tpu_custom_call.1}
  #allocation0 [shape = 'u32[]', space=smem, size = 0x4, offset = 0x4, fixed_abs, tag = 'smem constant byte address 0x4 - core index']
  #allocation1 [shape = 'u32[144,128]{1,0:T(1,128)}', space=vmem, size = 0x12000, scoped, tag = 'internal scratch']
  %s0 = inlined_call_operand.hbm [shape: f32[2,256], index: 0, kind: input, shape index: {}]
  %s1 = inlined_call_operand.hbm [shape: f32[2,4,256], index: 1, kind: input, shape index: {}]
  %s2 = inlined_call_operand.hbm [shape: f32[2,4,256], index: 2, kind: output, shape index: {}]
  %s3 = sld [smem:[#allocation0]]
  $region26: #{tpu_custom_call.1} parent=0
    _
  %s5 = ssub.s32 1, %s3
  %s6 = scalar_select 0, %s5, %s3
  $region1: #{tpu_custom_call.1} parent=0
    #allocation2 [shape = 'u8[2048]{0}', space=vmem, size = 0x800, scoped, tag = 'input window, operand 0, single buffered']
    #allocation3 [shape = 's32[1]{0}', space=sflag, size = 0x4, scoped, tag = 'scoped memory for tpu_custom_call.1']
    #allocation4 [shape = 's32[1]{0}', space=sflag, size = 0x4, scoped, tag = 'scoped memory for tpu_custom_call.1']
    #allocation5 [shape = 'u8[8192]{0}', space=vmem, size = 0x2000, scoped, tag = 'input window, operand 1, single buffered']
    #allocation6 [shape = 's32[1]{0}', space=sflag, size = 0x4, scoped, tag = 'scoped memory for tpu_custom_call.1']
    #allocation7 [shape = 'u8[8192]{0}', space=vmem, size = 0x2000, scoped, tag = 'output window, operand 0, single buffered']
    %7 = vsyncpa [#allocation3], 0
    %8 = vsyncpa [#allocation6], 0
    %9 = vsyncpa [#allocation4], 0
    // Predicated region
    $region2: #{tpu_custom_call.1} parent=1 // pred_check
      _
    $region3: #{tpu_custom_call.1} parent=1 // pred_check_branch
      %11 = sbr.rel (0) target = $region5
    $region4: #{tpu_custom_call.1} parent=1 // pred_region
      %s13 = ssub.s32 64, 64
      %14 = vsyncadd [#allocation3], %s13
      %s16 = sshll.u32 [#allocation2], 4
      %s17 = int_to_ptr.vmem [resolvable:$true] %s16
      %19 = dma.hbm_to_vmem [thread:$0]  %s0, 64, %s17, [#allocation3]
    $region5: #{tpu_custom_call.1} parent=1 // pred_fallthru
      _
    // Predicated region
    $region6: #{tpu_custom_call.1} parent=1 // pred_check
      _
    $region7: #{tpu_custom_call.1} parent=1 // pred_check_branch
      %21 = sbr.rel (0) target = $region9
    $region8: #{tpu_custom_call.1} parent=1 // pred_region
      %s23 = ssub.s32 256, 256
      %24 = vsyncadd [#allocation6], %s23
      %s25 = sshll.u32 [#allocation5], 4
      %s26 = int_to_ptr.vmem [resolvable:$true] %s25
      %31 = dma.hbm_to_vmem [thread:$0]  %s1, 256, %s26, [#allocation6], 128, 128, 8
    $region9: #{tpu_custom_call.1} parent=1 // pred_fallthru
      _
    // Predicated region
    $region10: #{tpu_custom_call.1} parent=1 // pred_check
      _
    $region11: #{tpu_custom_call.1} parent=1 // pred_check_branch
      %33 = sbr.rel (0) target = $region13
    $region12: #{tpu_custom_call.1} parent=1 // pred_region
      %34 = dma.done [#allocation3], 64
    $region13: #{tpu_custom_call.1} parent=1 // pred_fallthru
      _
    // Predicated region
    $region14: #{tpu_custom_call.1} parent=1 // pred_check
      _
    $region15: #{tpu_custom_call.1} parent=1 // pred_check_branch
      %36 = sbr.rel (0) target = $region17
    $region16: #{tpu_custom_call.1} parent=1 // pred_region
      %37 = dma.done [#allocation6], 256
    $region17: #{tpu_custom_call.1} parent=1 // pred_fallthru
      _
    %v38 = vld [vmem:[#allocation5] sm:$0xff]
    %v39 = vld [vmem:[#allocation5 + $0x8] sm:$0xff]
    %v42 = vcombine.high %v38, %v38
    %v43 = vcombine.high %v39, %v39
    %vm46 = vcmask 1043456
    %v47 = vsel %vm46, %v38, 0.0
    %v48 = vrot.slane %v47, 4
    %v49 = vadd.f32 %v47, %v48
    %v50 = vrot.slane %v49, 2
    %v51 = vadd.f32 %v49, %v50
    %v52 = vrot.slane %v51, 1
    %v53 = vadd.f32 %v51, %v52
    %v54 = vsel %vm46, %v42, 0.0
    %v55 = vrot.slane %v54, 4
    %v56 = vadd.f32 %v54, %v55
    %v57 = vrot.slane %v56, 2
    %v58 = vadd.f32 %v56, %v57
    %v59 = vrot.slane %v58, 1
    %v60 = vadd.f32 %v58, %v59
    %v61 = vsel %vm46, %v39, 0.0
    %v62 = vrot.slane %v61, 4
    %v63 = vadd.f32 %v61, %v62
    %v64 = vrot.slane %v63, 2
    %v65 = vadd.f32 %v63, %v64
    %v66 = vrot.slane %v65, 1
    %v67 = vadd.f32 %v65, %v66
    %v68 = vsel %vm46, %v43, 0.0
    %v69 = vrot.slane %v68, 4
    %v70 = vadd.f32 %v68, %v69
    %v71 = vrot.slane %v70, 2
    %v72 = vadd.f32 %v70, %v71
    %v73 = vrot.slane %v72, 1
    %v74 = vadd.f32 %v72, %v73
    %v75 = vld [vmem:[#allocation2] ss:$2 sm:$0x3]
    %s76 = scalar_lea.vmem [#allocation2], 1
    %v77 = vld [vmem:[%s76] ss:$2 sm:$0x3]
    %vm82 = vcmask 1041409
    %v83 = vsel %vm82, %v67, %v53
    %v84 = vsel %vm82, %v74, %v60
    %87 = vrot.lane.b32.xlu0 %v83, 1
    %v88 = vpop.permute.xlu0 %87
    %89 = vrot.lane.b32.xlu0 %v84, 1
    %v90 = vpop.permute.xlu0 %89
    %v91 = vlaneseq
    %v92 = vand.u32 %v91, 127
    %vm93 = vcmp.lt.s32.totalorder %v92, 1
    %v94 = vsel %vm93, %v88, %v90
    %v95 = vsel %vm93, %v90, %v88
    %v97 = vlaneseq
    %v98 = vshrl.u32 %v97, 7
    %v99 = vsub.s32 0, %v98
    %v100 = vrot.slane %v75, %v99
    %v101 = vlaneseq
    %v102 = vshrl.u32 %v101, 7
    %v103 = vsub.s32 1, %v102
    %v104 = vrot.slane %v75, %v103
    %v107 = vmul.f32 %v100, %v95
    %v108 = vmul.f32 %v104, %v94
    %109 = vrot.lane.b32.xlu0 %v83, 127
    %v110 = vpop.permute.xlu0 %109
    %111 = vrot.lane.b32.xlu0 %v84, 127
    %v112 = vpop.permute.xlu0 %111
    %vm113 = vcmp.lt.s32.totalorder %v92, 127
    %v114 = vsel %vm113, %v110, %v112
    %v115 = vsel %vm113, %v112, %v110
    %v117 = vlaneseq
    %v118 = vshrl.u32 %v117, 7
    %v119 = vsub.s32 0, %v118
    %v120 = vrot.slane %v77, %v119
    %v121 = vlaneseq
    %v122 = vshrl.u32 %v121, 7
    %v123 = vsub.s32 1, %v122
    %v124 = vrot.slane %v77, %v123
    %v127 = vmul.f32 %v120, %v114
    %v128 = vmul.f32 %v124, %v115
    %v131 = vrot.slane %v107, 1
    %v132 = vrot.slane %v108, 1
    %v137 = vadd.f32 %v53, %v107
    %v138 = vadd.f32 %v60, %v108
    %v139 = vadd.f32 %v67, %v131
    %v140 = vadd.f32 %v74, %v132
    %v143 = vrot.slane %v127, 1
    %v144 = vrot.slane %v128, 1
    %v149 = vadd.f32 %v137, %v127
    %v150 = vadd.f32 %v138, %v128
    %v151 = vadd.f32 %v139, %v143
    %v152 = vadd.f32 %v140, %v144
    %v153 = vadd.s32 %v92, 128
    %vm154 = vcmp.ge.s32.totalorder %v92, 16
    %vm155 = vcmp.ge.s32.totalorder %v153, 16
    %v160 = vrot.slane %v151, 7
    %v161 = vsel %vm82, %v160, %v149
    %v162 = vrot.slane %v152, 7
    %v163 = vsel %vm82, %v162, %v150
    %166 = vrot.lane.b32.xlu0 %v161, 16
    %v167 = vpop.permute.xlu0 %166
    %168 = vrot.lane.b32.xlu0 %v163, 16
    %v169 = vpop.permute.xlu0 %168
    %vm170 = vcmp.lt.s32.totalorder %v92, 16
    %v171 = vsel %vm170, %v167, %v169
    %v172 = vsel %vm170, %v169, %v167
    %v173 = vsel %vm154, %v172, 0.0
    %v174 = vsel %vm155, %v171, 0.0
    %vm175 = vcmp.lt.s32.totalorder %v92, 240
    %vm176 = vcmp.lt.s32.totalorder %v153, 240
    %177 = vrot.lane.b32.xlu0 %v161, 112
    %v178 = vpop.permute.xlu0 %177
    %179 = vrot.lane.b32.xlu0 %v163, 112
    %v180 = vpop.permute.xlu0 %179
    %vm181 = vcmp.lt.s32.totalorder %v92, 112
    %v182 = vsel %vm181, %v178, %v180
    %v183 = vsel %vm181, %v180, %v178
    %v184 = vsel %vm175, %v182, 0.0
    %v185 = vsel %vm176, %v183, 0.0
    %v188 = vrot.slane %v173, 1
    %v189 = vrot.slane %v174, 1
    %v194 = vadd.f32 %v149, %v173
    %v195 = vadd.f32 %v150, %v174
    %v196 = vadd.f32 %v151, %v188
    %v197 = vadd.f32 %v152, %v189
    %v200 = vrot.slane %v184, 1
    %v201 = vrot.slane %v185, 1
    %v206 = vadd.f32 %v194, %v184
    %v207 = vadd.f32 %v195, %v185
    %v208 = vadd.f32 %v196, %v200
    %v209 = vadd.f32 %v197, %v201
    %v210 = vmul.f32 %v53, 9.0
    %v211 = vmul.f32 %v60, 9.0
    %v212 = vmul.f32 %v67, 9.0
    %v213 = vmul.f32 %v74, 9.0
    %v214 = vsub.f32 %v210, %v206
    %v215 = vsub.f32 %v211, %v207
    %v216 = vsub.f32 %v212, %v208
    %v217 = vsub.f32 %v213, %v209
    %v218 = vlaneseq
    %v219 = vshrl.u32 %v218, 7
    %v220 = vsub.s32 0, %v219
    %v221 = vrot.slane %v214, %v220
    %v222 = vlaneseq
    %v223 = vshrl.u32 %v222, 7
    %v224 = vsub.s32 0, %v223
    %v225 = vrot.slane %v215, %v224
    %v226 = vlaneseq
    %v227 = vshrl.u32 %v226, 7
    %v228 = vsub.s32 0, %v227
    %v229 = vrot.slane %v216, %v228
    %v230 = vlaneseq
    %v231 = vshrl.u32 %v230, 7
    %v232 = vsub.s32 0, %v231
    %v233 = vrot.slane %v217, %v232
    %v238 = vcombine.low %v221, %v225
    %v239 = vcombine.low %v229, %v233
    %242 = vst [vmem:[#allocation7] sm:$0xff] %v238
    %243 = vst [vmem:[#allocation7 + $0x8] sm:$0xff] %v239
    // Predicated region
    $region18: #{tpu_custom_call.1} parent=1 // pred_check
      _
    $region19: #{tpu_custom_call.1} parent=1 // pred_check_branch
      %245 = sbr.rel (0) target = $region21
    $region20: #{tpu_custom_call.1} parent=1 // pred_region
      %s247 = ssub.s32 256, 256
      %248 = vsyncadd [#allocation4], %s247
      %s249 = sshll.u32 [#allocation7], 4
      %s250 = int_to_ptr.vmem [resolvable:$true] %s249
      %255 = dma.vmem_to_hbm [thread:$0]  %s250, 256, %s2, [#allocation4], 128, 128, 8
    $region21: #{tpu_custom_call.1} parent=1 // pred_fallthru
      _
    // Predicated region
    $region22: #{tpu_custom_call.1} parent=1 // pred_check
      _
    $region23: #{tpu_custom_call.1} parent=1 // pred_check_branch
      %257 = sbr.rel (0) target = $region25
    $region24: #{tpu_custom_call.1} parent=1 // pred_region
      %258 = dma.done [#allocation4], 256
    $region25: #{tpu_custom_call.1} parent=1 // pred_fallthru
      _
    %259 = vsyncpa [#allocation3], 1
    %260 = vsyncpa [#allocation6], 1
    %261 = vsyncpa [#allocation4], 1

</llo_original>
